<compile_context>
chip_gen: v7x
topology: tpu7x:2x2x1
jax: 0.10.0
libtpu: 0.0.40
codegen_flags: <defaults>
</compile_context>

<pallas_src>
import math

import jax
import jax.numpy as jnp
from jax.experimental import pallas as pl
from jax.experimental.pallas import tpu as pltpu

# ---------------- hyper-parameters (match the PyTorch module defaults) -------
MARGIN_ARC = 0.35
MARGIN_AM = 0.0
SCALE = 64.0
# The reference forward uses `self.min_cos_theta`, never set in the snippet's
# __init__; the original FaceX-Zoo implementation defines it as
# cos(pi - margin_arc), reproduced here.
MIN_COS_THETA = math.cos(math.pi - MARGIN_ARC)
EPS = 1e-12  # F.normalize default eps


def _round_up(x, m):
    return (x + m - 1) // m * m


def cosface_kernel(feats_ref, weight_ref, inv_wnorm_ref, labels_ref, out_ref):
    """One (TB, TC) output tile.  grid = (C_tiles, B_tiles), C outer / B inner."""
    # cos_theta = (feats_n @ W_raw) * (1/||w_col||) on the MXU, f32 accumulation.
    # Column normalization folded into the epilogue -> no (D, TC) temporary.
    cos = jnp.dot(feats_ref[...], weight_ref[...],
                  preferred_element_type=jnp.float32)            # (TB, TC) f32
    cos = jnp.clip(cos * inv_wnorm_ref[...], -1.0, 1.0)          # clip AFTER scale

    # One-hot: shift the label into this C tile's local index space (a (TB, 1)
    # int op) instead of offsetting the full (TB, TC) iota.
    tc = out_ref.shape[1]
    local_lab = labels_ref[...] - pl.program_id(0) * tc          # (TB, 1)
    class_idx = jax.lax.broadcasted_iota(jnp.int32, cos.shape, 1)
    is_target = class_idx == local_lab                           # (TB, TC)

    # Fused margin + scale epilogue:
    #   target & cos >  thr -> (cos - margin_arc) * s
    #   target & cos <= thr -> (cos - margin_am ) * s
    #   non-target          ->  cos * s
    margin = jnp.where(cos > MIN_COS_THETA, MARGIN_ARC, MARGIN_AM)
    out_ref[...] = ((cos - jnp.where(is_target, margin, 0.0)) * SCALE
                    ).astype(out_ref.dtype)


def _device_tile_defaults():
    """Generation-aware defaults for (block_c, vmem_limit_bytes)."""
    try:
        kind = jax.devices()[0].device_kind.lower()
    except Exception:
        kind = ""
    if "v5" in kind or "v6" in kind:
        # 128 MiB physical VMEM: bigger C tiles -> fewer grid steps and fewer
        # re-streams of the feats tile from HBM.
        return 8192, 96 << 20
    # v7x (and conservative fallback): 64 MiB VMEM per TensorCore.
    return 2048, 48 << 20


def cosface_forward(feats, weight, labels, *, block_b=256, block_c=None,
                    matmul_dtype=jnp.bfloat16, out_dtype=jnp.bfloat16,
                    vmem_limit_bytes=None):
    """feats: (B, D) f32, weight: (D, C) f32, labels: (B,) int -> (B, C) out_dtype."""
    B, D = feats.shape
    Dw, C = weight.shape
    assert D == Dw

    def_c, def_vmem = _device_tile_defaults()
    if block_c is None:
        block_c = def_c
    if vmem_limit_bytes is None:
        vmem_limit_bytes = def_vmem

    tb = _round_up(block_b, 16)          # 16: sublane-pack-safe for bf16 tiles
    tc = min(_round_up(block_c, 128), _round_up(C, 128))
    Bp = _round_up(B, tb)
    Cp = _round_up(C, tc)

    # Pre-normalize feats rows once in f32 (rsqrt -> EUP-equivalent in XLA),
    # cast once to matmul_dtype, then zero-pad the batch dim.  Padded rows are
    # all-zero -> cos = 0 -> sliced off below.
    feats32 = feats.astype(jnp.float32)
    sumsq = jnp.sum(feats32 * feats32, axis=1, keepdims=True)
    feats_n = (feats32 * jax.lax.rsqrt(jnp.maximum(sumsq, EPS * EPS))
               ).astype(matmul_dtype)
    feats_p = jnp.pad(feats_n, ((0, Bp - B), (0, 0)))

    labels_p = jnp.pad(labels.astype(jnp.int32).reshape(B, 1),
                       ((0, Bp - B), (0, 0)), constant_values=-1)

    # Inverse column L2 norms from the UNPADDED f32 view (tiny (1, C) array);
    # the big weight is cast straight to matmul_dtype and zero-padded, so no
    # padded f32 copy of the full weight is ever written to HBM.  Padded
    # columns: weight == 0 -> cos == 0 regardless of the inv_wnorm pad value.
    w32 = weight.astype(jnp.float32)
    inv_wnorm = 1.0 / jnp.maximum(
        jnp.sqrt(jnp.sum(w32 * w32, axis=0, keepdims=True)), EPS)
    inv_wnorm_p = jnp.pad(inv_wnorm, ((0, 0), (0, Cp - C)))
    weight_p = jnp.pad(weight.astype(matmul_dtype), ((0, 0), (0, Cp - C)))

    grid = (Cp // tc, Bp // tb)  # C outer, B inner -> weight tile DMA'd once.

    out = pl.pallas_call(
        cosface_kernel,
        out_shape=jax.ShapeDtypeStruct((Bp, Cp), out_dtype),
        grid=grid,
        in_specs=[
            pl.BlockSpec((tb, D), lambda c, b: (b, 0)),   # pre-normed feats
            pl.BlockSpec((D, tc), lambda c, b: (0, c)),   # raw weight, b-indep.
            pl.BlockSpec((1, tc), lambda c, b: (0, c)),   # 1 / ||w_col||
            pl.BlockSpec((tb, 1), lambda c, b: (b, 0)),   # labels
        ],
        out_specs=pl.BlockSpec((tb, tc), lambda c, b: (b, c)),
        compiler_params=pltpu.CompilerParams(
            # No scratch carry anymore -> both axes independent; C first so
            # megacore sharding preserves per-core weight-tile reuse.
            dimension_semantics=("parallel", "parallel"),
            vmem_limit_bytes=vmem_limit_bytes,
        ),
    )(feats_p, weight_p, inv_wnorm_p, labels_p)

    return out[:B, :C]


def init_weight(key, feat_dim, num_class):
    """Mimic: Tensor(feat_dim, num_class).uniform_(-1,1).renorm_(2,1,1e-5).mul_(1e5)."""
    w = jax.random.uniform(key, (feat_dim, num_class), jnp.float32, -1.0, 1.0)
    col_norm = jnp.sqrt(jnp.sum(w * w, axis=0, keepdims=True))
    scale = jnp.minimum(1.0, 1e-5 / jnp.maximum(col_norm, 1e-20))
    return w * scale * 1e5


def reference_forward(feats, weight, labels):
    """Pure-JAX, full-f32 mirror of the PyTorch forward."""
    w_n = weight / jnp.maximum(
        jnp.sqrt(jnp.sum(weight * weight, axis=0, keepdims=True)), EPS)
    f_n = feats / jnp.maximum(
        jnp.sqrt(jnp.sum(feats * feats, axis=1, keepdims=True)), EPS)
    cos = jnp.clip(jnp.dot(f_n, w_n), -1.0, 1.0)
    cos_m = jnp.where(cos > MIN_COS_THETA, cos - MARGIN_ARC, cos - MARGIN_AM)
    onehot = labels[:, None] == jnp.arange(weight.shape[1])[None, :]
    return jnp.where(onehot, cos_m, cos) * SCALE


def reference_forward_quant(feats, weight, labels, matmul_dtype, out_dtype):
    """Reference that mirrors the kernel's quantization points exactly."""
    inv_wn = 1.0 / jnp.maximum(
        jnp.sqrt(jnp.sum(weight * weight, axis=0, keepdims=True)), EPS)
    sumsq = jnp.sum(feats * feats, axis=1, keepdims=True)
    f_n = (feats * jax.lax.rsqrt(jnp.maximum(sumsq, EPS * EPS))).astype(matmul_dtype)
    w_q = weight.astype(matmul_dtype)
    cos = jnp.clip(jnp.dot(f_n, w_q, preferred_element_type=jnp.float32) * inv_wn,
                   -1.0, 1.0)
    cos_m = jnp.where(cos > MIN_COS_THETA, cos - MARGIN_ARC, cos - MARGIN_AM)
    onehot = labels[:, None] == jnp.arange(weight.shape[1])[None, :]
    return (jnp.where(onehot, cos_m, cos) * SCALE).astype(out_dtype)


if __name__ == "__main__":
    B, D, C = 8, 32, 128  # batch, feat_dim, num_class (small test shapes)

    key = jax.random.PRNGKey(0)
    k_w, k_f, k_l = jax.random.split(key, 3)

    weight = init_weight(k_w, D, C)
    feats = jax.random.normal(k_f, (B, D), jnp.float32)
    labels = jax.random.randint(k_l, (B,), 0, C, jnp.int32)

    # f32 matmul / f32 output path: tight check vs PyTorch-semantics reference.
    out_f32 = jax.block_until_ready(
        cosface_forward(feats, weight, labels,
                        matmul_dtype=jnp.float32, out_dtype=jnp.float32))
    ref_f32 = reference_forward(feats, weight, labels)
    assert out_f32.shape == (B, C)
    assert jnp.allclose(out_f32, ref_f32, atol=1e-3, rtol=1e-5), "f32 mismatch"

    # Default path (bf16 matmul operands + bf16 output): checked against a
    # reference that applies the same quantization points; atol tolerates a
    # 1-ulp bf16 output rounding flip near magnitude 64.
    out_bf16 = jax.block_until_ready(cosface_forward(feats, weight, labels))
    ref_bf16 = reference_forward_quant(feats, weight, labels,
                                       jnp.bfloat16, jnp.bfloat16)
    assert out_bf16.shape == (B, C)
    assert out_bf16.dtype == jnp.bfloat16
    assert jnp.allclose(out_bf16.astype(jnp.float32),
                        ref_bf16.astype(jnp.float32), atol=0.6), "bf16 mismatch"

    print("KERNEL_OK")
</pallas_src>

<mosaic_0001>
module attributes {stable_mosaic.version = 11 : i64} {
  func.func @cosface_kernel(%arg0: i32, %arg1: i32, %arg2: memref<256x32xf32, #tpu.memory_space<vmem>>, %arg3: memref<32x128xf32, #tpu.memory_space<vmem>>, %arg4: memref<1x128xf32, #tpu.memory_space<vmem>>, %arg5: memref<256x1xi32, #tpu.memory_space<vmem>>, %arg6: memref<256x128xf32, #tpu.memory_space<vmem>>) attributes {dimension_semantics = [#tpu.dimension_semantics<parallel>, #tpu.dimension_semantics<parallel>], iteration_bounds = array<i64: 1, 1>, scalar_prefetch = 0 : i64, scratch_operands = 0 : i64, tpu.core_type = #tpu.core_type<tc>, window_params = [{transform_indices = @transform_0, window_bounds = array<i64: 256, 32>}, {transform_indices = @transform_1, window_bounds = array<i64: 32, 128>}, {transform_indices = @transform_2, window_bounds = array<i64: 1, 128>}, {transform_indices = @transform_3, window_bounds = array<i64: 256, 1>}, {transform_indices = @transform_4, window_bounds = array<i64: 256, 128>}]} {
    %c0 = arith.constant 0 : index
    %c0_0 = arith.constant 0 : index
    %0 = vector.load %arg2[%c0, %c0_0] : memref<256x32xf32, #tpu.memory_space<vmem>>, vector<256x32xf32>
    %c0_1 = arith.constant 0 : index
    %c0_2 = arith.constant 0 : index
    %1 = vector.load %arg3[%c0_1, %c0_2] : memref<32x128xf32, #tpu.memory_space<vmem>>, vector<32x128xf32>
    %cst = arith.constant dense<0.000000e+00> : vector<256x128xf32>
    %2 = tpu.matmul %0, %1, %cst {dimension_numbers = #tpu.dot_dimension_numbers<[1], [0], [0], [1], [0, 0, 1, 1], [], []>} : vector<256x32xf32>, vector<32x128xf32>, vector<256x128xf32> -> vector<256x128xf32>
    %c0_3 = arith.constant 0 : index
    %c0_4 = arith.constant 0 : index
    %3 = vector.load %arg4[%c0_3, %c0_4] : memref<1x128xf32, #tpu.memory_space<vmem>>, vector<1x128xf32>
    %4 = vector.broadcast %3 : vector<1x128xf32> to vector<256x128xf32>
    %5 = arith.mulf %2, %4 : vector<256x128xf32>
    %cst_5 = arith.constant -1.000000e+00 : f32
    %cst_6 = arith.constant 1.000000e+00 : f32
    %6 = vector.broadcast %cst_5 : f32 to vector<256x128xf32>
    %7 = arith.maximumf %6, %5 : vector<256x128xf32>
    %8 = vector.broadcast %cst_6 : f32 to vector<256x128xf32>
    %9 = arith.minimumf %8, %7 : vector<256x128xf32>
    %c0_7 = arith.constant 0 : index
    %c0_8 = arith.constant 0 : index
    %10 = vector.load %arg5[%c0_7, %c0_8] : memref<256x1xi32, #tpu.memory_space<vmem>>, vector<256x1xi32>
    %c128_i32 = arith.constant 128 : i32
    %11 = arith.muli %arg0, %c128_i32 : i32
    %12 = vector.broadcast %11 : i32 to vector<256x1xi32>
    %13 = arith.subi %10, %12 : vector<256x1xi32>
    %14 = tpu.iota {dimensions = array<i32: 1>} : vector<256x128xi32>
    %15 = vector.broadcast %13 : vector<256x1xi32> to vector<256x128xi32>
    %16 = arith.cmpi eq, %14, %15 : vector<256x128xi32>
    %cst_9 = arith.constant -0.939372718 : f32
    %17 = vector.broadcast %cst_9 : f32 to vector<256x128xf32>
    %18 = arith.cmpf ogt, %9, %17 : vector<256x128xf32>
    %cst_10 = arith.constant 3.500000e-01 : f32
    %cst_11 = arith.constant 0.000000e+00 : f32
    %19 = vector.broadcast %cst_10 : f32 to vector<256x128xf32>
    %20 = vector.broadcast %cst_11 : f32 to vector<256x128xf32>
    %21 = arith.select %18, %19, %20 : vector<256x128xi1>, vector<256x128xf32>
    %cst_12 = arith.constant 0.000000e+00 : f32
    %22 = vector.broadcast %cst_12 : f32 to vector<256x128xf32>
    %23 = arith.select %16, %21, %22 : vector<256x128xi1>, vector<256x128xf32>
    %24 = arith.subf %9, %23 : vector<256x128xf32>
    %cst_13 = arith.constant 6.400000e+01 : f32
    %25 = vector.broadcast %cst_13 : f32 to vector<256x128xf32>
    %26 = arith.mulf %24, %25 : vector<256x128xf32>
    %c0_14 = arith.constant 0 : index
    %c0_15 = arith.constant 0 : index
    %27 = vector.load %arg6[%c0_14, %c0_15] : memref<256x128xf32, #tpu.memory_space<vmem>>, vector<256x128xf32>
    tpu.vector_store %arg6[%c0_14, %c0_15], %26 {strides = array<i32>} : memref<256x128xf32, #tpu.memory_space<vmem>>, vector<256x128xf32>,
    return
  }
  func.func @transform_0(%arg0: i32, %arg1: i32) -> (i32, i32) {
    %c0_i32 = arith.constant 0 : i32
    %c0_i32_0 = arith.constant 0 : i32
    return %arg1, %c0_i32 : i32, i32
  }
  func.func @transform_1(%arg0: i32, %arg1: i32) -> (i32, i32) {
    %c0_i32 = arith.constant 0 : i32
    %c0_i32_0 = arith.constant 0 : i32
    return %c0_i32, %arg0 : i32, i32
  }
  func.func @transform_2(%arg0: i32, %arg1: i32) -> (i32, i32) {
    %c0_i32 = arith.constant 0 : i32
    %c0_i32_0 = arith.constant 0 : i32
    return %c0_i32, %arg0 : i32, i32
  }
  func.func @transform_3(%arg0: i32, %arg1: i32) -> (i32, i32) {
    %c0_i32 = arith.constant 0 : i32
    %c0_i32_0 = arith.constant 0 : i32
    return %arg1, %c0_i32 : i32, i32
  }
  func.func @transform_4(%arg0: i32, %arg1: i32) -> (i32, i32) {
    %c0_i32 = arith.constant 0 : i32
    return %arg1, %arg0 : i32, i32
  }
}

</mosaic_0001>

<llo_original>
// kernel: tpu_custom_call.1
$region0: #{tpu_custom_call.1}
  #allocation0 [shape = 'u32[]', space=smem, size = 0x4, offset = 0x4, fixed_abs, tag = 'smem constant byte address 0x4 - core index']
  #allocation1 [shape = 'u32[144,128]{1,0:T(1,128)}', space=vmem, size = 0x12000, scoped, tag = 'internal scratch']
  %s0 = inlined_call_operand.vmem [shape: f32[256,32], index: 0, kind: input, shape index: {}]
  %s1 = inlined_call_operand.vmem [shape: f32[32,128], index: 1, kind: input, shape index: {}]
  %s2 = inlined_call_operand.vmem [shape: f32[1,128], index: 2, kind: input, shape index: {}]
  %s3 = inlined_call_operand.vmem [shape: s32[256,1], index: 3, kind: input, shape index: {}]
  %s4 = inlined_call_operand.hbm [shape: f32[256,128], index: 4, kind: output, shape index: {}]
  %s5 = sld [smem:[#allocation0]]
  $region26: #{tpu_custom_call.1} parent=0
    _
  %s7 = ssub.s32 1, %s5
  %s8 = scalar_select 0, %s7, %s5
  $region1: #{tpu_custom_call.1} parent=0
    #allocation2 [shape = 'u8[131072]{0}', space=vmem, size = 0x20000, scoped, tag = 'output window, operand 0, single buffered']
    #allocation3 [shape = 's32[1]{0}', space=sflag, size = 0x4, scoped, tag = 'scoped memory for tpu_custom_call.1']
    %9 = vsyncpa [#allocation3], 0
    // Predicated region
    $region2: #{tpu_custom_call.1} parent=1 // pred_check
      _
    $region3: #{tpu_custom_call.1} parent=1 // pred_check_branch
      %11 = sbr.rel (0) target = $region5
    $region4: #{tpu_custom_call.1} parent=1 // pred_region
      _
    $region5: #{tpu_custom_call.1} parent=1 // pred_fallthru
      _
    // Predicated region
    $region6: #{tpu_custom_call.1} parent=1 // pred_check
      _
    $region7: #{tpu_custom_call.1} parent=1 // pred_check_branch
      %13 = sbr.rel (0) target = $region9
    $region8: #{tpu_custom_call.1} parent=1 // pred_region
      _
    $region9: #{tpu_custom_call.1} parent=1 // pred_fallthru
      _
    // Predicated region
    $region10: #{tpu_custom_call.1} parent=1 // pred_check
      _
    $region11: #{tpu_custom_call.1} parent=1 // pred_check_branch
      %15 = sbr.rel (0) target = $region13
    $region12: #{tpu_custom_call.1} parent=1 // pred_region
      _
    $region13: #{tpu_custom_call.1} parent=1 // pred_fallthru
      _
    // Predicated region
    $region14: #{tpu_custom_call.1} parent=1 // pred_check
      _
    $region15: #{tpu_custom_call.1} parent=1 // pred_check_branch
      %17 = sbr.rel (0) target = $region17
    $region16: #{tpu_custom_call.1} parent=1 // pred_region
      _
    $region17: #{tpu_custom_call.1} parent=1 // pred_fallthru
      _
    %v18 = vld [vmem:[%s0] sm:$0xff]
    %v19 = vld [vmem:[%s0 + $0x8] sm:$0xff]
    %v20 = vld [vmem:[%s0 + $0x10] sm:$0xff]
    %v21 = vld [vmem:[%s0 + $0x18] sm:$0xff]
    %v22 = vld [vmem:[%s0 + $0x20] sm:$0xff]
    %v23 = vld [vmem:[%s0 + $0x28] sm:$0xff]
    %v24 = vld [vmem:[%s0 + $0x30] sm:$0xff]
    %v25 = vld [vmem:[%s0 + $0x38] sm:$0xff]
    %v26 = vld [vmem:[%s0 + $0x40] sm:$0xff]
    %v27 = vld [vmem:[%s0 + $0x48] sm:$0xff]
    %v28 = vld [vmem:[%s0 + $0x50] sm:$0xff]
    %v29 = vld [vmem:[%s0 + $0x58] sm:$0xff]
    %v30 = vld [vmem:[%s0 + $0x60] sm:$0xff]
    %v31 = vld [vmem:[%s0 + $0x68] sm:$0xff]
    %v32 = vld [vmem:[%s0 + $0x70] sm:$0xff]
    %v33 = vld [vmem:[%s0 + $0x78] sm:$0xff]
    %v34 = vld [vmem:[%s0 + $0x80] sm:$0xff]
    %v35 = vld [vmem:[%s0 + $0x88] sm:$0xff]
    %v36 = vld [vmem:[%s0 + $0x90] sm:$0xff]
    %v37 = vld [vmem:[%s0 + $0x98] sm:$0xff]
    %v38 = vld [vmem:[%s0 + $0xa0] sm:$0xff]
    %v39 = vld [vmem:[%s0 + $0xa8] sm:$0xff]
    %v40 = vld [vmem:[%s0 + $0xb0] sm:$0xff]
    %v41 = vld [vmem:[%s0 + $0xb8] sm:$0xff]
    %v42 = vld [vmem:[%s0 + $0xc0] sm:$0xff]
    %v43 = vld [vmem:[%s0 + $0xc8] sm:$0xff]
    %v44 = vld [vmem:[%s0 + $0xd0] sm:$0xff]
    %v45 = vld [vmem:[%s0 + $0xd8] sm:$0xff]
    %v46 = vld [vmem:[%s0 + $0xe0] sm:$0xff]
    %v47 = vld [vmem:[%s0 + $0xe8] sm:$0xff]
    %v48 = vld [vmem:[%s0 + $0xf0] sm:$0xff]
    %v49 = vld [vmem:[%s0 + $0xf8] sm:$0xff]
    %v50 = vld [vmem:[%s1] sm:$0xff]
    %v51 = vld [vmem:[%s1 + $0x8] sm:$0xff]
    %v52 = vld [vmem:[%s1 + $0x10] sm:$0xff]
    %v53 = vld [vmem:[%s1 + $0x18] sm:$0xff]
    %vm54 = vcmask 261120
    %v56 = vsel %vm54, %v18, 0
    %v59 = vsel %vm54, %v19, 0
    %v62 = vsel %vm54, %v20, 0
    %v65 = vsel %vm54, %v21, 0
    %v68 = vsel %vm54, %v22, 0
    %v71 = vsel %vm54, %v23, 0
    %v74 = vsel %vm54, %v24, 0
    %v77 = vsel %vm54, %v25, 0
    %v80 = vsel %vm54, %v26, 0
    %v83 = vsel %vm54, %v27, 0
    %v86 = vsel %vm54, %v28, 0
    %v89 = vsel %vm54, %v29, 0
    %v92 = vsel %vm54, %v30, 0
    %v95 = vsel %vm54, %v31, 0
    %v98 = vsel %vm54, %v32, 0
    %v101 = vsel %vm54, %v33, 0
    %v104 = vsel %vm54, %v34, 0
    %v107 = vsel %vm54, %v35, 0
    %v110 = vsel %vm54, %v36, 0
    %v113 = vsel %vm54, %v37, 0
    %v116 = vsel %vm54, %v38, 0
    %v119 = vsel %vm54, %v39, 0
    %v122 = vsel %vm54, %v40, 0
    %v125 = vsel %vm54, %v41, 0
    %v128 = vsel %vm54, %v42, 0
    %v131 = vsel %vm54, %v43, 0
    %v134 = vsel %vm54, %v44, 0
    %v137 = vsel %vm54, %v45, 0
    %v140 = vsel %vm54, %v46, 0
    %v143 = vsel %vm54, %v47, 0
    %v146 = vsel %vm54, %v48, 0
    %v149 = vsel %vm54, %v49, 0
    %151 = vmatprep.subr.mxu0 0.0
    %152 = vmatpush1.msra.mxu0 %v50
    %153 = vmatprep.subr.mxu0 0.0
    %154 = vmatpush1.msra.mxu0 %v51
    %155 = vmatprep.subr.mxu0 0.0
    %156 = vmatpush1.msra.mxu0 %v52
    %157 = vmatprep.subr.mxu0 0.0
    %158 = vmatpush1.msra.mxu0 %v53
    %159 = vmatprep.subr.mxu0 0.0
    %160 = vmatpush1.msra.mxu0 0.0
    %161 = vmatprep.subr.mxu0 0.0
    %162 = vmatpush1.msra.mxu0 0.0
    %163 = vmatprep.subr.mxu0 0.0
    %164 = vmatpush1.msra.mxu0 0.0
    %165 = vmatprep.subr.mxu0 0.0
    %166 = vmatpush1.msra.mxu0 0.0
    %167 = vmatprep.subr.mxu0 0.0
    %168 = vmatpush1.msra.mxu0 0.0
    %169 = vmatprep.subr.mxu0 0.0
    %170 = vmatpush1.msra.mxu0 0.0
    %171 = vmatprep.subr.mxu0 0.0
    %172 = vmatpush1.msra.mxu0 0.0
    %173 = vmatprep.subr.mxu0 0.0
    %174 = vmatpush1.msra.mxu0 0.0
    %175 = vmatprep.subr.mxu0 0.0
    %176 = vmatpush1.msra.mxu0 0.0
    %177 = vmatprep.subr.mxu0 0.0
    %178 = vmatpush1.msra.mxu0 0.0
    %179 = vmatprep.subr.mxu0 0.0
    %180 = vmatpush1.msra.mxu0 0.0
    %181 = vmatprep.subr.mxu0 0.0
    %182 = vmatpush1.msra.mxu0 0.0
    %183 = vmatprep.subr.mxu0 0.0
    %184 = vmatpush1.msra.mxu0 0.0
    %185 = vmatprep.subr.mxu0 0.0
    %186 = vmatpush1.msra.mxu0 0.0
    %187 = vmatprep.subr.mxu0 0.0
    %188 = vmatpush1.msra.mxu0 0.0
    %189 = vmatprep.subr.mxu0 0.0
    %190 = vmatpush1.msra.mxu0 0.0
    %191 = vmatprep.subr.mxu0 0.0
    %192 = vmatpush1.msra.mxu0 0.0
    %193 = vmatprep.subr.mxu0 0.0
    %194 = vmatpush1.msra.mxu0 0.0
    %195 = vmatprep.subr.mxu0 0.0
    %196 = vmatpush1.msra.mxu0 0.0
    %197 = vmatprep.subr.mxu0 0.0
    %198 = vmatpush1.msra.mxu0 0.0
    %199 = vmatprep.subr.mxu0 0.0
    %200 = vmatpush1.msra.mxu0 0.0
    %201 = vmatprep.subr.mxu0 0.0
    %202 = vmatpush1.msra.mxu0 0.0
    %203 = vmatprep.subr.mxu0 0.0
    %204 = vmatpush1.msra.mxu0 0.0
    %205 = vmatprep.subr.mxu0 0.0
    %206 = vmatpush1.msra.mxu0 0.0
    %207 = vmatprep.subr.mxu0 0.0
    %208 = vmatpush1.msra.mxu0 0.0
    %209 = vmatprep.subr.mxu0 0.0
    %210 = vmatpush1.msra.mxu0 0.0
    %211 = vmatprep.subr.mxu0 0.0
    %212 = vmatpush1.msra.mxu0 0.0
    %213 = vmatprep.subr.mxu0 0.0
    %214 = vmatpush1.msra.mxu0 0.0
    %215 = vmatprep.mubr.f32.mxu0 0.0
    %216 = vmatmul.mubr.f32.gmra.mrb[0].mxu0 %v56
    %v217 = vpop.f32.mrb[0].mxu0
    %v218 = vadd.f32 0.0, %v217
    %v219 = vpop.f32.mrb[0].mxu0
    %220 = vmatprep.mubr.f32.mxu0 0.0
    %221 = vmatmul.mubr.f32.gmra.mrb[0].mxu0 %v59
    %v222 = vpop.f32.mrb[0].mxu0
    %v223 = vadd.f32 0.0, %v222
    %v224 = vpop.f32.mrb[0].mxu0
    %225 = vmatprep.mubr.f32.mxu0 0.0
    %226 = vmatmul.mubr.f32.gmra.mrb[0].mxu0 %v62
    %v227 = vpop.f32.mrb[0].mxu0
    %v228 = vadd.f32 0.0, %v227
    %v229 = vpop.f32.mrb[0].mxu0
    %230 = vmatprep.mubr.f32.mxu0 0.0
    %231 = vmatmul.mubr.f32.gmra.mrb[0].mxu0 %v65
    %v232 = vpop.f32.mrb[0].mxu0
    %v233 = vadd.f32 0.0, %v232
    %v234 = vpop.f32.mrb[0].mxu0
    %235 = vmatprep.mubr.f32.mxu0 0.0
    %236 = vmatmul.mubr.f32.gmra.mrb[0].mxu0 %v68
    %v237 = vpop.f32.mrb[0].mxu0
    %v238 = vadd.f32 0.0, %v237
    %v239 = vpop.f32.mrb[0].mxu0
    %240 = vmatprep.mubr.f32.mxu0 0.0
    %241 = vmatmul.mubr.f32.gmra.mrb[0].mxu0 %v71
    %v242 = vpop.f32.mrb[0].mxu0
    %v243 = vadd.f32 0.0, %v242
    %v244 = vpop.f32.mrb[0].mxu0
    %245 = vmatprep.mubr.f32.mxu0 0.0
    %246 = vmatmul.mubr.f32.gmra.mrb[0].mxu0 %v74
    %v247 = vpop.f32.mrb[0].mxu0
    %v248 = vadd.f32 0.0, %v247
    %v249 = vpop.f32.mrb[0].mxu0
    %250 = vmatprep.mubr.f32.mxu0 0.0
    %251 = vmatmul.mubr.f32.gmra.mrb[0].mxu0 %v77
    %v252 = vpop.f32.mrb[0].mxu0
    %v253 = vadd.f32 0.0, %v252
    %v254 = vpop.f32.mrb[0].mxu0
    %255 = vmatprep.mubr.f32.mxu0 0.0
    %256 = vmatmul.mubr.f32.gmra.mrb[0].mxu0 %v80
    %v257 = vpop.f32.mrb[0].mxu0
    %v258 = vadd.f32 0.0, %v257
    %v259 = vpop.f32.mrb[0].mxu0
    %260 = vmatprep.mubr.f32.mxu0 0.0
    %261 = vmatmul.mubr.f32.gmra.mrb[0].mxu0 %v83
    %v262 = vpop.f32.mrb[0].mxu0
    %v263 = vadd.f32 0.0, %v262
    %v264 = vpop.f32.mrb[0].mxu0
    %265 = vmatprep.mubr.f32.mxu0 0.0
    %266 = vmatmul.mubr.f32.gmra.mrb[0].mxu0 %v86
    %v267 = vpop.f32.mrb[0].mxu0
    %v268 = vadd.f32 0.0, %v267
    %v269 = vpop.f32.mrb[0].mxu0
    %270 = vmatprep.mubr.f32.mxu0 0.0
    %271 = vmatmul.mubr.f32.gmra.mrb[0].mxu0 %v89
    %v272 = vpop.f32.mrb[0].mxu0
    %v273 = vadd.f32 0.0, %v272
    %v274 = vpop.f32.mrb[0].mxu0
    %275 = vmatprep.mubr.f32.mxu0 0.0
    %276 = vmatmul.mubr.f32.gmra.mrb[0].mxu0 %v92
    %v277 = vpop.f32.mrb[0].mxu0
    %v278 = vadd.f32 0.0, %v277
    %v279 = vpop.f32.mrb[0].mxu0
    %280 = vmatprep.mubr.f32.mxu0 0.0
    %281 = vmatmul.mubr.f32.gmra.mrb[0].mxu0 %v95
    %v282 = vpop.f32.mrb[0].mxu0
    %v283 = vadd.f32 0.0, %v282
    %v284 = vpop.f32.mrb[0].mxu0
    %285 = vmatprep.mubr.f32.mxu0 0.0
    %286 = vmatmul.mubr.f32.gmra.mrb[0].mxu0 %v98
    %v287 = vpop.f32.mrb[0].mxu0
    %v288 = vadd.f32 0.0, %v287
    %v289 = vpop.f32.mrb[0].mxu0
    %290 = vmatprep.mubr.f32.mxu0 0.0
    %291 = vmatmul.mubr.f32.gmra.mrb[0].mxu0 %v101
    %v292 = vpop.f32.mrb[0].mxu0
    %v293 = vadd.f32 0.0, %v292
    %v294 = vpop.f32.mrb[0].mxu0
    %295 = vmatprep.mubr.f32.mxu0 0.0
    %296 = vmatmul.mubr.f32.gmra.mrb[0].mxu0 %v104
    %v297 = vpop.f32.mrb[0].mxu0
    %v298 = vadd.f32 0.0, %v297
    %v299 = vpop.f32.mrb[0].mxu0
    %300 = vmatprep.mubr.f32.mxu0 0.0
    %301 = vmatmul.mubr.f32.gmra.mrb[0].mxu0 %v107
    %v302 = vpop.f32.mrb[0].mxu0
    %v303 = vadd.f32 0.0, %v302
    %v304 = vpop.f32.mrb[0].mxu0
    %305 = vmatprep.mubr.f32.mxu0 0.0
    %306 = vmatmul.mubr.f32.gmra.mrb[0].mxu0 %v110
    %v307 = vpop.f32.mrb[0].mxu0
    %v308 = vadd.f32 0.0, %v307
    %v309 = vpop.f32.mrb[0].mxu0
    %310 = vmatprep.mubr.f32.mxu0 0.0
    %311 = vmatmul.mubr.f32.gmra.mrb[0].mxu0 %v113
    %v312 = vpop.f32.mrb[0].mxu0
    %v313 = vadd.f32 0.0, %v312
    %v314 = vpop.f32.mrb[0].mxu0
    %315 = vmatprep.mubr.f32.mxu0 0.0
    %316 = vmatmul.mubr.f32.gmra.mrb[0].mxu0 %v116
    %v317 = vpop.f32.mrb[0].mxu0
    %v318 = vadd.f32 0.0, %v317
    %v319 = vpop.f32.mrb[0].mxu0
    %320 = vmatprep.mubr.f32.mxu0 0.0
    %321 = vmatmul.mubr.f32.gmra.mrb[0].mxu0 %v119
    %v322 = vpop.f32.mrb[0].mxu0
    %v323 = vadd.f32 0.0, %v322
    %v324 = vpop.f32.mrb[0].mxu0
    %325 = vmatprep.mubr.f32.mxu0 0.0
    %326 = vmatmul.mubr.f32.gmra.mrb[0].mxu0 %v122
    %v327 = vpop.f32.mrb[0].mxu0
    %v328 = vadd.f32 0.0, %v327
    %v329 = vpop.f32.mrb[0].mxu0
    %330 = vmatprep.mubr.f32.mxu0 0.0
    %331 = vmatmul.mubr.f32.gmra.mrb[0].mxu0 %v125
    %v332 = vpop.f32.mrb[0].mxu0
    %v333 = vadd.f32 0.0, %v332
    %v334 = vpop.f32.mrb[0].mxu0
    %335 = vmatprep.mubr.f32.mxu0 0.0
    %336 = vmatmul.mubr.f32.gmra.mrb[0].mxu0 %v128
    %v337 = vpop.f32.mrb[0].mxu0
    %v338 = vadd.f32 0.0, %v337
    %v339 = vpop.f32.mrb[0].mxu0
    %340 = vmatprep.mubr.f32.mxu0 0.0
    %341 = vmatmul.mubr.f32.gmra.mrb[0].mxu0 %v131
    %v342 = vpop.f32.mrb[0].mxu0
    %v343 = vadd.f32 0.0, %v342
    %v344 = vpop.f32.mrb[0].mxu0
    %345 = vmatprep.mubr.f32.mxu0 0.0
    %346 = vmatmul.mubr.f32.gmra.mrb[0].mxu0 %v134
    %v347 = vpop.f32.mrb[0].mxu0
    %v348 = vadd.f32 0.0, %v347
    %v349 = vpop.f32.mrb[0].mxu0
    %350 = vmatprep.mubr.f32.mxu0 0.0
    %351 = vmatmul.mubr.f32.gmra.mrb[0].mxu0 %v137
    %v352 = vpop.f32.mrb[0].mxu0
    %v353 = vadd.f32 0.0, %v352
    %v354 = vpop.f32.mrb[0].mxu0
    %355 = vmatprep.mubr.f32.mxu0 0.0
    %356 = vmatmul.mubr.f32.gmra.mrb[0].mxu0 %v140
    %v357 = vpop.f32.mrb[0].mxu0
    %v358 = vadd.f32 0.0, %v357
    %v359 = vpop.f32.mrb[0].mxu0
    %360 = vmatprep.mubr.f32.mxu0 0.0
    %361 = vmatmul.mubr.f32.gmra.mrb[0].mxu0 %v143
    %v362 = vpop.f32.mrb[0].mxu0
    %v363 = vadd.f32 0.0, %v362
    %v364 = vpop.f32.mrb[0].mxu0
    %365 = vmatprep.mubr.f32.mxu0 0.0
    %366 = vmatmul.mubr.f32.gmra.mrb[0].mxu0 %v146
    %v367 = vpop.f32.mrb[0].mxu0
    %v368 = vadd.f32 0.0, %v367
    %v369 = vpop.f32.mrb[0].mxu0
    %370 = vmatprep.mubr.f32.mxu0 0.0
    %371 = vmatmul.mubr.f32.gmra.mrb[0].mxu0 %v149
    %v372 = vpop.f32.mrb[0].mxu0
    %v373 = vadd.f32 0.0, %v372
    %v374 = vpop.f32.mrb[0].mxu0
    %375 = vdwg.mxu0
    %v376 = vld [vmem:[%s2] sm:$0x1]
    %v378 = vlaneseq
    %v379 = vshrl.u32 %v378, 7
    %v380 = vsub.s32 0, %v379
    %v381 = vrot.slane %v376, %v380
    %v383 = vmul.f32 %v218, %v381
    %v384 = vmul.f32 %v223, %v381
    %v385 = vmul.f32 %v228, %v381
    %v386 = vmul.f32 %v233, %v381
    %v387 = vmul.f32 %v238, %v381
    %v388 = vmul.f32 %v243, %v381
    %v389 = vmul.f32 %v248, %v381
    %v390 = vmul.f32 %v253, %v381
    %v391 = vmul.f32 %v258, %v381
    %v392 = vmul.f32 %v263, %v381
    %v393 = vmul.f32 %v268, %v381
    %v394 = vmul.f32 %v273, %v381
    %v395 = vmul.f32 %v278, %v381
    %v396 = vmul.f32 %v283, %v381
    %v397 = vmul.f32 %v288, %v381
    %v398 = vmul.f32 %v293, %v381
    %v399 = vmul.f32 %v298, %v381
    %v400 = vmul.f32 %v303, %v381
    %v401 = vmul.f32 %v308, %v381
    %v402 = vmul.f32 %v313, %v381
    %v403 = vmul.f32 %v318, %v381
    %v404 = vmul.f32 %v323, %v381
    %v405 = vmul.f32 %v328, %v381
    %v406 = vmul.f32 %v333, %v381
    %v407 = vmul.f32 %v338, %v381
    %v408 = vmul.f32 %v343, %v381
    %v409 = vmul.f32 %v348, %v381
    %v410 = vmul.f32 %v353, %v381
    %v411 = vmul.f32 %v358, %v381
    %v412 = vmul.f32 %v363, %v381
    %v413 = vmul.f32 %v368, %v381
    %v414 = vmul.f32 %v373, %v381
    %v415 = vmax.f32 %v383, -1.0
    %v416 = vmax.f32 %v384, -1.0
    %v417 = vmax.f32 %v385, -1.0
    %v418 = vmax.f32 %v386, -1.0
    %v419 = vmax.f32 %v387, -1.0
    %v420 = vmax.f32 %v388, -1.0
    %v421 = vmax.f32 %v389, -1.0
    %v422 = vmax.f32 %v390, -1.0
    %v423 = vmax.f32 %v391, -1.0
    %v424 = vmax.f32 %v392, -1.0
    %v425 = vmax.f32 %v393, -1.0
    %v426 = vmax.f32 %v394, -1.0
    %v427 = vmax.f32 %v395, -1.0
    %v428 = vmax.f32 %v396, -1.0
    %v429 = vmax.f32 %v397, -1.0
    %v430 = vmax.f32 %v398, -1.0
    %v431 = vmax.f32 %v399, -1.0
    %v432 = vmax.f32 %v400, -1.0
    %v433 = vmax.f32 %v401, -1.0
    %v434 = vmax.f32 %v402, -1.0
    %v435 = vmax.f32 %v403, -1.0
    %v436 = vmax.f32 %v404, -1.0
    %v437 = vmax.f32 %v405, -1.0
    %v438 = vmax.f32 %v406, -1.0
    %v439 = vmax.f32 %v407, -1.0
    %v440 = vmax.f32 %v408, -1.0
    %v441 = vmax.f32 %v409, -1.0
    %v442 = vmax.f32 %v410, -1.0
    %v443 = vmax.f32 %v411, -1.0
    %v444 = vmax.f32 %v412, -1.0
    %v445 = vmax.f32 %v413, -1.0
    %v446 = vmax.f32 %v414, -1.0
    %v447 = vmin.f32 %v415, 1.0
    %v448 = vmin.f32 %v416, 1.0
    %v449 = vmin.f32 %v417, 1.0
    %v450 = vmin.f32 %v418, 1.0
    %v451 = vmin.f32 %v419, 1.0
    %v452 = vmin.f32 %v420, 1.0
    %v453 = vmin.f32 %v421, 1.0
    %v454 = vmin.f32 %v422, 1.0
    %v455 = vmin.f32 %v423, 1.0
    %v456 = vmin.f32 %v424, 1.0
    %v457 = vmin.f32 %v425, 1.0
    %v458 = vmin.f32 %v426, 1.0
    %v459 = vmin.f32 %v427, 1.0
    %v460 = vmin.f32 %v428, 1.0
    %v461 = vmin.f32 %v429, 1.0
    %v462 = vmin.f32 %v430, 1.0
    %v463 = vmin.f32 %v431, 1.0
    %v464 = vmin.f32 %v432, 1.0
    %v465 = vmin.f32 %v433, 1.0
    %v466 = vmin.f32 %v434, 1.0
    %v467 = vmin.f32 %v435, 1.0
    %v468 = vmin.f32 %v436, 1.0
    %v469 = vmin.f32 %v437, 1.0
    %v470 = vmin.f32 %v438, 1.0
    %v471 = vmin.f32 %v439, 1.0
    %v472 = vmin.f32 %v440, 1.0
    %v473 = vmin.f32 %v441, 1.0
    %v474 = vmin.f32 %v442, 1.0
    %v475 = vmin.f32 %v443, 1.0
    %v476 = vmin.f32 %v444, 1.0
    %v477 = vmin.f32 %v445, 1.0
    %v478 = vmin.f32 %v446, 1.0
    %v479 = vld [vmem:[%s3] sm:$0xff]
    %v480 = vld [vmem:[%s3 + $0x8] sm:$0xff]
    %v481 = vld [vmem:[%s3 + $0x10] sm:$0xff]
    %v482 = vld [vmem:[%s3 + $0x18] sm:$0xff]
    %v483 = vld [vmem:[%s3 + $0x20] sm:$0xff]
    %v484 = vld [vmem:[%s3 + $0x28] sm:$0xff]
    %v485 = vld [vmem:[%s3 + $0x30] sm:$0xff]
    %v486 = vld [vmem:[%s3 + $0x38] sm:$0xff]
    %v487 = vld [vmem:[%s3 + $0x40] sm:$0xff]
    %v488 = vld [vmem:[%s3 + $0x48] sm:$0xff]
    %v489 = vld [vmem:[%s3 + $0x50] sm:$0xff]
    %v490 = vld [vmem:[%s3 + $0x58] sm:$0xff]
    %v491 = vld [vmem:[%s3 + $0x60] sm:$0xff]
    %v492 = vld [vmem:[%s3 + $0x68] sm:$0xff]
    %v493 = vld [vmem:[%s3 + $0x70] sm:$0xff]
    %v494 = vld [vmem:[%s3 + $0x78] sm:$0xff]
    %v495 = vld [vmem:[%s3 + $0x80] sm:$0xff]
    %v496 = vld [vmem:[%s3 + $0x88] sm:$0xff]
    %v497 = vld [vmem:[%s3 + $0x90] sm:$0xff]
    %v498 = vld [vmem:[%s3 + $0x98] sm:$0xff]
    %v499 = vld [vmem:[%s3 + $0xa0] sm:$0xff]
    %v500 = vld [vmem:[%s3 + $0xa8] sm:$0xff]
    %v501 = vld [vmem:[%s3 + $0xb0] sm:$0xff]
    %v502 = vld [vmem:[%s3 + $0xb8] sm:$0xff]
    %v503 = vld [vmem:[%s3 + $0xc0] sm:$0xff]
    %v504 = vld [vmem:[%s3 + $0xc8] sm:$0xff]
    %v505 = vld [vmem:[%s3 + $0xd0] sm:$0xff]
    %v506 = vld [vmem:[%s3 + $0xd8] sm:$0xff]
    %v507 = vld [vmem:[%s3 + $0xe0] sm:$0xff]
    %v508 = vld [vmem:[%s3 + $0xe8] sm:$0xff]
    %v509 = vld [vmem:[%s3 + $0xf0] sm:$0xff]
    %v510 = vld [vmem:[%s3 + $0xf8] sm:$0xff]
    %s511 = smul.u32 0, 128
    %v512 = vstv %s511
    %v513 = vsub.s32 %v479, %v512
    %v514 = vsub.s32 %v480, %v512
    %v515 = vsub.s32 %v481, %v512
    %v516 = vsub.s32 %v482, %v512
    %v517 = vsub.s32 %v483, %v512
    %v518 = vsub.s32 %v484, %v512
    %v519 = vsub.s32 %v485, %v512
    %v520 = vsub.s32 %v486, %v512
    %v521 = vsub.s32 %v487, %v512
    %v522 = vsub.s32 %v488, %v512
    %v523 = vsub.s32 %v489, %v512
    %v524 = vsub.s32 %v490, %v512
    %v525 = vsub.s32 %v491, %v512
    %v526 = vsub.s32 %v492, %v512
    %v527 = vsub.s32 %v493, %v512
    %v528 = vsub.s32 %v494, %v512
    %v529 = vsub.s32 %v495, %v512
    %v530 = vsub.s32 %v496, %v512
    %v531 = vsub.s32 %v497, %v512
    %v532 = vsub.s32 %v498, %v512
    %v533 = vsub.s32 %v499, %v512
    %v534 = vsub.s32 %v500, %v512
    %v535 = vsub.s32 %v501, %v512
    %v536 = vsub.s32 %v502, %v512
    %v537 = vsub.s32 %v503, %v512
    %v538 = vsub.s32 %v504, %v512
    %v539 = vsub.s32 %v505, %v512
    %v540 = vsub.s32 %v506, %v512
    %v541 = vsub.s32 %v507, %v512
    %v542 = vsub.s32 %v508, %v512
    %v543 = vsub.s32 %v509, %v512
    %v544 = vsub.s32 %v510, %v512
    %v545 = vlaneseq
    %v546 = vand.u32 %v545, 127
    %547 = vset.pattern.permute.xlu0 0
    %548 = vperm.xlu0 %547, %v513
    %v549 = vpop.permute.xlu0 %548
    %550 = vset.pattern.permute.xlu0 0
    %551 = vperm.xlu0 %550, %v514
    %v552 = vpop.permute.xlu0 %551
    %553 = vset.pattern.permute.xlu0 0
    %554 = vperm.xlu0 %553, %v515
    %v555 = vpop.permute.xlu0 %554
    %556 = vset.pattern.permute.xlu0 0
    %557 = vperm.xlu0 %556, %v516
    %v558 = vpop.permute.xlu0 %557
    %559 = vset.pattern.permute.xlu0 0
    %560 = vperm.xlu0 %559, %v517
    %v561 = vpop.permute.xlu0 %560
    %562 = vset.pattern.permute.xlu0 0
    %563 = vperm.xlu0 %562, %v518
    %v564 = vpop.permute.xlu0 %563
    %565 = vset.pattern.permute.xlu0 0
    %566 = vperm.xlu0 %565, %v519
    %v567 = vpop.permute.xlu0 %566
    %568 = vset.pattern.permute.xlu0 0
    %569 = vperm.xlu0 %568, %v520
    %v570 = vpop.permute.xlu0 %569
    %571 = vset.pattern.permute.xlu0 0
    %572 = vperm.xlu0 %571, %v521
    %v573 = vpop.permute.xlu0 %572
    %574 = vset.pattern.permute.xlu0 0
    %575 = vperm.xlu0 %574, %v522
    %v576 = vpop.permute.xlu0 %575
    %577 = vset.pattern.permute.xlu0 0
    %578 = vperm.xlu0 %577, %v523
    %v579 = vpop.permute.xlu0 %578
    %580 = vset.pattern.permute.xlu0 0
    %581 = vperm.xlu0 %580, %v524
    %v582 = vpop.permute.xlu0 %581
    %583 = vset.pattern.permute.xlu0 0
    %584 = vperm.xlu0 %583, %v525
    %v585 = vpop.permute.xlu0 %584
    %586 = vset.pattern.permute.xlu0 0
    %587 = vperm.xlu0 %586, %v526
    %v588 = vpop.permute.xlu0 %587
    %589 = vset.pattern.permute.xlu0 0
    %590 = vperm.xlu0 %589, %v527
    %v591 = vpop.permute.xlu0 %590
    %592 = vset.pattern.permute.xlu0 0
    %593 = vperm.xlu0 %592, %v528
    %v594 = vpop.permute.xlu0 %593
    %595 = vset.pattern.permute.xlu0 0
    %596 = vperm.xlu0 %595, %v529
    %v597 = vpop.permute.xlu0 %596
    %598 = vset.pattern.permute.xlu0 0
    %599 = vperm.xlu0 %598, %v530
    %v600 = vpop.permute.xlu0 %599
    %601 = vset.pattern.permute.xlu0 0
    %602 = vperm.xlu0 %601, %v531
    %v603 = vpop.permute.xlu0 %602
    %604 = vset.pattern.permute.xlu0 0
    %605 = vperm.xlu0 %604, %v532
    %v606 = vpop.permute.xlu0 %605
    %607 = vset.pattern.permute.xlu0 0
    %608 = vperm.xlu0 %607, %v533
    %v609 = vpop.permute.xlu0 %608
    %610 = vset.pattern.permute.xlu0 0
    %611 = vperm.xlu0 %610, %v534
    %v612 = vpop.permute.xlu0 %611
    %613 = vset.pattern.permute.xlu0 0
    %614 = vperm.xlu0 %613, %v535
    %v615 = vpop.permute.xlu0 %614
    %616 = vset.pattern.permute.xlu0 0
    %617 = vperm.xlu0 %616, %v536
    %v618 = vpop.permute.xlu0 %617
    %619 = vset.pattern.permute.xlu0 0
    %620 = vperm.xlu0 %619, %v537
    %v621 = vpop.permute.xlu0 %620
    %622 = vset.pattern.permute.xlu0 0
    %623 = vperm.xlu0 %622, %v538
    %v624 = vpop.permute.xlu0 %623
    %625 = vset.pattern.permute.xlu0 0
    %626 = vperm.xlu0 %625, %v539
    %v627 = vpop.permute.xlu0 %626
    %628 = vset.pattern.permute.xlu0 0
    %629 = vperm.xlu0 %628, %v540
    %v630 = vpop.permute.xlu0 %629
    %631 = vset.pattern.permute.xlu0 0
    %632 = vperm.xlu0 %631, %v541
    %v633 = vpop.permute.xlu0 %632
    %634 = vset.pattern.permute.xlu0 0
    %635 = vperm.xlu0 %634, %v542
    %v636 = vpop.permute.xlu0 %635
    %637 = vset.pattern.permute.xlu0 0
    %638 = vperm.xlu0 %637, %v543
    %v639 = vpop.permute.xlu0 %638
    %640 = vset.pattern.permute.xlu0 0
    %641 = vperm.xlu0 %640, %v544
    %v642 = vpop.permute.xlu0 %641
    %vm643 = vcmp.eq.s32.totalorder %v546, %v549
    %vm644 = vcmp.eq.s32.totalorder %v546, %v552
    %vm645 = vcmp.eq.s32.totalorder %v546, %v555
    %vm646 = vcmp.eq.s32.totalorder %v546, %v558
    %vm647 = vcmp.eq.s32.totalorder %v546, %v561
    %vm648 = vcmp.eq.s32.totalorder %v546, %v564
    %vm649 = vcmp.eq.s32.totalorder %v546, %v567
    %vm650 = vcmp.eq.s32.totalorder %v546, %v570
    %vm651 = vcmp.eq.s32.totalorder %v546, %v573
    %vm652 = vcmp.eq.s32.totalorder %v546, %v576
    %vm653 = vcmp.eq.s32.totalorder %v546, %v579
    %vm654 = vcmp.eq.s32.totalorder %v546, %v582
    %vm655 = vcmp.eq.s32.totalorder %v546, %v585
    %vm656 = vcmp.eq.s32.totalorder %v546, %v588
    %vm657 = vcmp.eq.s32.totalorder %v546, %v591
    %vm658 = vcmp.eq.s32.totalorder %v546, %v594
    %vm659 = vcmp.eq.s32.totalorder %v546, %v597
    %vm660 = vcmp.eq.s32.totalorder %v546, %v600
    %vm661 = vcmp.eq.s32.totalorder %v546, %v603
    %vm662 = vcmp.eq.s32.totalorder %v546, %v606
    %vm663 = vcmp.eq.s32.totalorder %v546, %v609
    %vm664 = vcmp.eq.s32.totalorder %v546, %v612
    %vm665 = vcmp.eq.s32.totalorder %v546, %v615
    %vm666 = vcmp.eq.s32.totalorder %v546, %v618
    %vm667 = vcmp.eq.s32.totalorder %v546, %v621
    %vm668 = vcmp.eq.s32.totalorder %v546, %v624
    %vm669 = vcmp.eq.s32.totalorder %v546, %v627
    %vm670 = vcmp.eq.s32.totalorder %v546, %v630
    %vm671 = vcmp.eq.s32.totalorder %v546, %v633
    %vm672 = vcmp.eq.s32.totalorder %v546, %v636
    %vm673 = vcmp.eq.s32.totalorder %v546, %v639
    %vm674 = vcmp.eq.s32.totalorder %v546, %v642
    %vm675 = vcmp.gt.f32.partialorder %v447, -0.9393727
    %vm676 = vcmp.gt.f32.partialorder %v448, -0.9393727
    %vm677 = vcmp.gt.f32.partialorder %v449, -0.9393727
    %vm678 = vcmp.gt.f32.partialorder %v450, -0.9393727
    %vm679 = vcmp.gt.f32.partialorder %v451, -0.9393727
    %vm680 = vcmp.gt.f32.partialorder %v452, -0.9393727
    %vm681 = vcmp.gt.f32.partialorder %v453, -0.9393727
    %vm682 = vcmp.gt.f32.partialorder %v454, -0.9393727
    %vm683 = vcmp.gt.f32.partialorder %v455, -0.9393727
    %vm684 = vcmp.gt.f32.partialorder %v456, -0.9393727
    %vm685 = vcmp.gt.f32.partialorder %v457, -0.9393727
    %vm686 = vcmp.gt.f32.partialorder %v458, -0.9393727
    %vm687 = vcmp.gt.f32.partialorder %v459, -0.9393727
    %vm688 = vcmp.gt.f32.partialorder %v460, -0.9393727
    %vm689 = vcmp.gt.f32.partialorder %v461, -0.9393727
    %vm690 = vcmp.gt.f32.partialorder %v462, -0.9393727
    %vm691 = vcmp.gt.f32.partialorder %v463, -0.9393727
    %vm692 = vcmp.gt.f32.partialorder %v464, -0.9393727
    %vm693 = vcmp.gt.f32.partialorder %v465, -0.9393727
    %vm694 = vcmp.gt.f32.partialorder %v466, -0.9393727
    %vm695 = vcmp.gt.f32.partialorder %v467, -0.9393727
    %vm696 = vcmp.gt.f32.partialorder %v468, -0.9393727
    %vm697 = vcmp.gt.f32.partialorder %v469, -0.9393727
    %vm698 = vcmp.gt.f32.partialorder %v470, -0.9393727
    %vm699 = vcmp.gt.f32.partialorder %v471, -0.9393727
    %vm700 = vcmp.gt.f32.partialorder %v472, -0.9393727
    %vm701 = vcmp.gt.f32.partialorder %v473, -0.9393727
    %vm702 = vcmp.gt.f32.partialorder %v474, -0.9393727
    %vm703 = vcmp.gt.f32.partialorder %v475, -0.9393727
    %vm704 = vcmp.gt.f32.partialorder %v476, -0.9393727
    %vm705 = vcmp.gt.f32.partialorder %v477, -0.9393727
    %vm706 = vcmp.gt.f32.partialorder %v478, -0.9393727
    %v707 = vsel %vm675, 0.35, 0.0
    %v708 = vsel %vm676, 0.35, 0.0
    %v709 = vsel %vm677, 0.35, 0.0
    %v710 = vsel %vm678, 0.35, 0.0
    %v711 = vsel %vm679, 0.35, 0.0
    %v712 = vsel %vm680, 0.35, 0.0
    %v713 = vsel %vm681, 0.35, 0.0
    %v714 = vsel %vm682, 0.35, 0.0
    %v715 = vsel %vm683, 0.35, 0.0
    %v716 = vsel %vm684, 0.35, 0.0
    %v717 = vsel %vm685, 0.35, 0.0
    %v718 = vsel %vm686, 0.35, 0.0
    %v719 = vsel %vm687, 0.35, 0.0
    %v720 = vsel %vm688, 0.35, 0.0
    %v721 = vsel %vm689, 0.35, 0.0
    %v722 = vsel %vm690, 0.35, 0.0
    %v723 = vsel %vm691, 0.35, 0.0
    %v724 = vsel %vm692, 0.35, 0.0
    %v725 = vsel %vm693, 0.35, 0.0
    %v726 = vsel %vm694, 0.35, 0.0
    %v727 = vsel %vm695, 0.35, 0.0
    %v728 = vsel %vm696, 0.35, 0.0
    %v729 = vsel %vm697, 0.35, 0.0
    %v730 = vsel %vm698, 0.35, 0.0
    %v731 = vsel %vm699, 0.35, 0.0
    %v732 = vsel %vm700, 0.35, 0.0
    %v733 = vsel %vm701, 0.35, 0.0
    %v734 = vsel %vm702, 0.35, 0.0
    %v735 = vsel %vm703, 0.35, 0.0
    %v736 = vsel %vm704, 0.35, 0.0
    %v737 = vsel %vm705, 0.35, 0.0
    %v738 = vsel %vm706, 0.35, 0.0
    %v739 = vsel %vm643, %v707, 0.0
    %v740 = vsel %vm644, %v708, 0.0
    %v741 = vsel %vm645, %v709, 0.0
    %v742 = vsel %vm646, %v710, 0.0
    %v743 = vsel %vm647, %v711, 0.0
    %v744 = vsel %vm648, %v712, 0.0
    %v745 = vsel %vm649, %v713, 0.0
    %v746 = vsel %vm650, %v714, 0.0
    %v747 = vsel %vm651, %v715, 0.0
    %v748 = vsel %vm652, %v716, 0.0
    %v749 = vsel %vm653, %v717, 0.0
    %v750 = vsel %vm654, %v718, 0.0
    %v751 = vsel %vm655, %v719, 0.0
    %v752 = vsel %vm656, %v720, 0.0
    %v753 = vsel %vm657, %v721, 0.0
    %v754 = vsel %vm658, %v722, 0.0
    %v755 = vsel %vm659, %v723, 0.0
    %v756 = vsel %vm660, %v724, 0.0
    %v757 = vsel %vm661, %v725, 0.0
    %v758 = vsel %vm662, %v726, 0.0
    %v759 = vsel %vm663, %v727, 0.0
    %v760 = vsel %vm664, %v728, 0.0
    %v761 = vsel %vm665, %v729, 0.0
    %v762 = vsel %vm666, %v730, 0.0
    %v763 = vsel %vm667, %v731, 0.0
    %v764 = vsel %vm668, %v732, 0.0
    %v765 = vsel %vm669, %v733, 0.0
    %v766 = vsel %vm670, %v734, 0.0
    %v767 = vsel %vm671, %v735, 0.0
    %v768 = vsel %vm672, %v736, 0.0
    %v769 = vsel %vm673, %v737, 0.0
    %v770 = vsel %vm674, %v738, 0.0
    %v771 = vsub.f32 %v447, %v739
    %v772 = vsub.f32 %v448, %v740
    %v773 = vsub.f32 %v449, %v741
    %v774 = vsub.f32 %v450, %v742
    %v775 = vsub.f32 %v451, %v743
    %v776 = vsub.f32 %v452, %v744
    %v777 = vsub.f32 %v453, %v745
    %v778 = vsub.f32 %v454, %v746
    %v779 = vsub.f32 %v455, %v747
    %v780 = vsub.f32 %v456, %v748
    %v781 = vsub.f32 %v457, %v749
    %v782 = vsub.f32 %v458, %v750
    %v783 = vsub.f32 %v459, %v751
    %v784 = vsub.f32 %v460, %v752
    %v785 = vsub.f32 %v461, %v753
    %v786 = vsub.f32 %v462, %v754
    %v787 = vsub.f32 %v463, %v755
    %v788 = vsub.f32 %v464, %v756
    %v789 = vsub.f32 %v465, %v757
    %v790 = vsub.f32 %v466, %v758
    %v791 = vsub.f32 %v467, %v759
    %v792 = vsub.f32 %v468, %v760
    %v793 = vsub.f32 %v469, %v761
    %v794 = vsub.f32 %v470, %v762
    %v795 = vsub.f32 %v471, %v763
    %v796 = vsub.f32 %v472, %v764
    %v797 = vsub.f32 %v473, %v765
    %v798 = vsub.f32 %v474, %v766
    %v799 = vsub.f32 %v475, %v767
    %v800 = vsub.f32 %v476, %v768
    %v801 = vsub.f32 %v477, %v769
    %v802 = vsub.f32 %v478, %v770
    %v803 = vmul.f32 %v771, 64.0
    %v804 = vmul.f32 %v772, 64.0
    %v805 = vmul.f32 %v773, 64.0
    %v806 = vmul.f32 %v774, 64.0
    %v807 = vmul.f32 %v775, 64.0
    %v808 = vmul.f32 %v776, 64.0
    %v809 = vmul.f32 %v777, 64.0
    %v810 = vmul.f32 %v778, 64.0
    %v811 = vmul.f32 %v779, 64.0
    %v812 = vmul.f32 %v780, 64.0
    %v813 = vmul.f32 %v781, 64.0
    %v814 = vmul.f32 %v782, 64.0
    %v815 = vmul.f32 %v783, 64.0
    %v816 = vmul.f32 %v784, 64.0
    %v817 = vmul.f32 %v785, 64.0
    %v818 = vmul.f32 %v786, 64.0
    %v819 = vmul.f32 %v787, 64.0
    %v820 = vmul.f32 %v788, 64.0
    %v821 = vmul.f32 %v789, 64.0
    %v822 = vmul.f32 %v790, 64.0
    %v823 = vmul.f32 %v791, 64.0
    %v824 = vmul.f32 %v792, 64.0
    %v825 = vmul.f32 %v793, 64.0
    %v826 = vmul.f32 %v794, 64.0
    %v827 = vmul.f32 %v795, 64.0
    %v828 = vmul.f32 %v796, 64.0
    %v829 = vmul.f32 %v797, 64.0
    %v830 = vmul.f32 %v798, 64.0
    %v831 = vmul.f32 %v799, 64.0
    %v832 = vmul.f32 %v800, 64.0
    %v833 = vmul.f32 %v801, 64.0
    %v834 = vmul.f32 %v802, 64.0
    %835 = vst [vmem:[#allocation2] sm:$0xff] %v803
    %836 = vst [vmem:[#allocation2 + $0x8] sm:$0xff] %v804
    %837 = vst [vmem:[#allocation2 + $0x10] sm:$0xff] %v805
    %838 = vst [vmem:[#allocation2 + $0x18] sm:$0xff] %v806
    %839 = vst [vmem:[#allocation2 + $0x20] sm:$0xff] %v807
    %840 = vst [vmem:[#allocation2 + $0x28] sm:$0xff] %v808
    %841 = vst [vmem:[#allocation2 + $0x30] sm:$0xff] %v809
    %842 = vst [vmem:[#allocation2 + $0x38] sm:$0xff] %v810
    %843 = vst [vmem:[#allocation2 + $0x40] sm:$0xff] %v811
    %844 = vst [vmem:[#allocation2 + $0x48] sm:$0xff] %v812
    %845 = vst [vmem:[#allocation2 + $0x50] sm:$0xff] %v813
    %846 = vst [vmem:[#allocation2 + $0x58] sm:$0xff] %v814
    %847 = vst [vmem:[#allocation2 + $0x60] sm:$0xff] %v815
    %848 = vst [vmem:[#allocation2 + $0x68] sm:$0xff] %v816
    %849 = vst [vmem:[#allocation2 + $0x70] sm:$0xff] %v817
    %850 = vst [vmem:[#allocation2 + $0x78] sm:$0xff] %v818
    %851 = vst [vmem:[#allocation2 + $0x80] sm:$0xff] %v819
    %852 = vst [vmem:[#allocation2 + $0x88] sm:$0xff] %v820
    %853 = vst [vmem:[#allocation2 + $0x90] sm:$0xff] %v821
    %854 = vst [vmem:[#allocation2 + $0x98] sm:$0xff] %v822
    %855 = vst [vmem:[#allocation2 + $0xa0] sm:$0xff] %v823
    %856 = vst [vmem:[#allocation2 + $0xa8] sm:$0xff] %v824
    %857 = vst [vmem:[#allocation2 + $0xb0] sm:$0xff] %v825
    %858 = vst [vmem:[#allocation2 + $0xb8] sm:$0xff] %v826
    %859 = vst [vmem:[#allocation2 + $0xc0] sm:$0xff] %v827
    %860 = vst [vmem:[#allocation2 + $0xc8] sm:$0xff] %v828
    %861 = vst [vmem:[#allocation2 + $0xd0] sm:$0xff] %v829
    %862 = vst [vmem:[#allocation2 + $0xd8] sm:$0xff] %v830
    %863 = vst [vmem:[#allocation2 + $0xe0] sm:$0xff] %v831
    %864 = vst [vmem:[#allocation2 + $0xe8] sm:$0xff] %v832
    %865 = vst [vmem:[#allocation2 + $0xf0] sm:$0xff] %v833
    %866 = vst [vmem:[#allocation2 + $0xf8] sm:$0xff] %v834
    // Predicated region
    $region18: #{tpu_custom_call.1} parent=1 // pred_check
      _
    $region19: #{tpu_custom_call.1} parent=1 // pred_check_branch
      %868 = sbr.rel (0) target = $region21
    $region20: #{tpu_custom_call.1} parent=1 // pred_region
      %s870 = ssub.s32 4096, 4096
      %871 = vsyncadd [#allocation3], %s870
      %s872 = sshll.u32 [#allocation2], 4
      %s873 = int_to_ptr.vmem [resolvable:$true] %s872
      %878 = dma.vmem_to_hbm [thread:$0]  %s873, 4096, %s4, [#allocation3], 128, 128, 8
    $region21: #{tpu_custom_call.1} parent=1 // pred_fallthru
      _
    // Predicated region
    $region22: #{tpu_custom_call.1} parent=1 // pred_check
      _
    $region23: #{tpu_custom_call.1} parent=1 // pred_check_branch
      %880 = sbr.rel (0) target = $region25
    $region24: #{tpu_custom_call.1} parent=1 // pred_region
      %881 = dma.done [#allocation3], 4096
    $region25: #{tpu_custom_call.1} parent=1 // pred_fallthru
      _
    %882 = vsyncpa [#allocation3], 1

</llo_original>
